<compile_context>
chip_gen: v5e
topology: v5e:2x2
jax: 0.10.0
libtpu: 0.0.40
codegen_flags: <defaults>
</compile_context>

<pallas_src>
import jax
import jax.numpy as jnp
from jax.experimental import pallas as pl
from jax.experimental.pallas import tpu as pltpu


def _round_up(x, m):
    return ((x + m - 1) // m) * m


def _patch_embed_kernel(x_ref, w_ref, b_ref, o_ref):
    # x_ref: (tm, K_pad) bf16, w_ref: (K_pad, E_pad) bf16, b_ref: (1, E_pad) f32,
    # o_ref: (tm, E_pad) in the final output dtype.
    # MXU matmul with f32 accumulation; bias added in f32; single store in
    # the final dtype (no separate downstream cast pass).
    acc = jnp.dot(x_ref[...], w_ref[...], preferred_element_type=jnp.float32)
    o_ref[...] = (acc + b_ref[...]).astype(o_ref.dtype)


def _vmem_policy():
    """Generation-aware VMEM limit + tile budget.

    v5e / v6e have 128 MiB physical VMEM -> 64 MiB limit, ~56 MiB tile budget
    (lets big-E/K models keep the largest tile).  v7x has 64 MiB physical
    (32 MiB scoped default) -> 32 MiB / 26 MiB.  Unknown or failed query
    falls back to the tight (v7x-safe) numbers.
    """
    limit, budget = 32 * 1024 * 1024, 26 * 1024 * 1024
    try:
        cap = int(getattr(pltpu.get_tpu_info(), "vmem_capacity_bytes", 0) or 0)
        if cap >= 96 * 1024 * 1024:
            limit, budget = 64 * 1024 * 1024, 56 * 1024 * 1024
    except Exception:
        pass
    return limit, budget


def _choose_tm(m_rows, k_pad, e_pad, out_bytes, vmem_budget_bytes):
    """Largest MXU-aligned M tile that (a) fits the VMEM budget,
    (b) gives the pipeliner / v7x megacore at least ~4 grid steps, and
    (c) wastes <= ~15% of MXU work and DMA on M padding.
    Falls back to 128 when M is too small for (b)/(c)."""
    for tm in (1024, 768, 512, 384, 256, 128):
        need = (2 * tm * k_pad * 2              # LHS tiles, bf16, double-buffered
                + 2 * tm * e_pad * out_bytes    # output tiles, double-buffered
                + 2 * k_pad * e_pad * 2         # weight (grid-invariant, 2x buffered)
                + 2 * 8 * e_pad * 4)            # bias (sublane-padded)
        if need > vmem_budget_bytes:
            continue
        m_pad = _round_up(m_rows, tm)
        if tm > 128:
            if m_pad // tm < 4:                 # keep both v7x TCs + pipeline busy
                continue
            if (m_pad - m_rows) > 0.15 * m_rows:  # bound dead-row MXU / DMA waste
                continue
        return tm
    return 128


def patch_embed_matmul(patches, weight, bias, *, tm, out_dtype, vmem_limit_bytes):
    """patches: (M_pad, K_pad) bf16, weight: (K_pad, E_pad) bf16,
    bias: (1, E_pad) f32  ->  (M_pad, E_pad) in `out_dtype`."""
    M, K = patches.shape
    E = weight.shape[1]
    grid = (M // tm,)  # M is already padded to a multiple of tm
    return pl.pallas_call(
        _patch_embed_kernel,
        out_shape=jax.ShapeDtypeStruct((M, E), out_dtype),
        grid_spec=pltpu.PrefetchScalarGridSpec(
            num_scalar_prefetch=0,
            grid=grid,
            in_specs=[
                pl.BlockSpec((tm, K), lambda i: (i, 0)),  # patch rows, tiled over M
                # TODO(synk): once pipeline_mode=pl.Buffered(1) is confirmed on the
                # auto-pipeliner, single-buffer these two grid-invariant operands to
                # free K_pad*E_pad*2 bytes of VMEM on the tight v7x budget.
                pl.BlockSpec((K, E), lambda i: (0, 0)),   # grid-invariant weight
                pl.BlockSpec((1, E), lambda i: (0, 0)),   # grid-invariant bias
            ],
            out_specs=pl.BlockSpec((tm, E), lambda i: (i, 0)),
        ),
        compiler_params=pltpu.CompilerParams(
            # "parallel" lets v7x shard M tiles across its 2 TensorCores;
            # harmless no-op on v5e / v6e.
            dimension_semantics=("parallel",),
            vmem_limit_bytes=vmem_limit_bytes,
        ),
    )(patches, weight, bias)


def patch_embed_forward(x, conv_w, conv_b, *, patch_size, flatten=True):
    """x: (B, C, H, W) NCHW, conv_w: (E, C, ph, pw), conv_b: (E,).

    Returns (B, N, E) if flatten else (B, E, Hg, Wg), matching PyTorch.
    """
    B, C, H, W = x.shape
    E = conv_w.shape[0]
    ph, pw = patch_size
    Hg, Wg = H // ph, W // pw
    N = Hg * Wg
    M = B * N
    K = C * ph * pw
    out_dtype = x.dtype

    # Pad K and E to lane multiples (zero rows/cols keep the dot exact); a
    # 128-multiple E gives lane-dense (unmasked) output stores in the kernel.
    K_pad = _round_up(K, 128)
    E_pad = _round_up(E, 128)

    vmem_limit, vmem_budget = _vmem_policy()
    tm = _choose_tm(M, K_pad, E_pad, jnp.dtype(out_dtype).itemsize, vmem_budget)
    M_pad = _round_up(M, tm)

    # Patch extraction: feature order per patch is (c, kh, kw) to match the
    # Conv2d weight layout (E, C, kh, kw).  The reshape/transpose/cast/pad
    # chain is pure data movement, so XLA fuses it into one producer: x is
    # read once (f32) and the bf16 patches slab is written once before the
    # kernel streams it back in.
    # TODO(synk): fold patchify into the kernel (grid over batch, reorder in
    # VMEM) to remove this remaining M*K bf16 HBM round-trip entirely.
    xp = x[:, :, :Hg * ph, :Wg * pw].reshape(B, C, Hg, ph, Wg, pw)
    xp = jnp.transpose(xp, (0, 2, 4, 1, 3, 5)).astype(jnp.bfloat16)
    patches = xp.reshape(M, K)
    patches = jnp.pad(patches, ((0, M_pad - M), (0, K_pad - K)))

    w2d = conv_w.reshape(E, K).T.astype(jnp.bfloat16)            # (K, E)
    w2d = jnp.pad(w2d, ((0, K_pad - K), (0, E_pad - E)))
    b2d = jnp.pad(conv_b.reshape(1, E).astype(jnp.float32), ((0, 0), (0, E_pad - E)))

    # TODO(synk): on v5e, when K_pad > K, fold the bias into a spare LHS
    # column (set to 1.0) + a weight row to drop the per-tile VPU bias add.
    out = patch_embed_matmul(patches, w2d, b2d, tm=tm, out_dtype=out_dtype,
                             vmem_limit_bytes=vmem_limit)        # (M_pad, E_pad)
    out = out[:M, :E]                                            # already final dtype

    if flatten:
        return out.reshape(B, N, E)                   # == x.flatten(2).transpose(1, 2)
    # norm_layer=None in the reference module -> Identity: nothing to apply.
    return jnp.transpose(out.reshape(B, Hg, Wg, E), (0, 3, 1, 2))


if __name__ == "__main__":
    # Small shapes consistent with the module: img=16, patch=8, in_chans=4, embed_dim=32
    B, C, H, W = 2, 4, 16, 16
    ph = pw = 8
    E = 32

    key = jax.random.PRNGKey(0)
    kx, kw, kb = jax.random.split(key, 3)
    x = jax.random.normal(kx, (B, C, H, W), dtype=jnp.float32)
    # Deterministic synthetic parameters (Conv2d(in_chans, embed_dim, k=patch, s=patch))
    conv_w = jax.random.normal(kw, (E, C, ph, pw), dtype=jnp.float32) * 0.02
    conv_b = jax.random.normal(kb, (E,), dtype=jnp.float32) * 0.02

    out = patch_embed_forward(x, conv_w, conv_b, patch_size=(ph, pw), flatten=True)
    out = jax.block_until_ready(out)

    # Pure-JAX f32 reference (strided conv == patch matmul).
    ref = jax.lax.conv_general_dilated(
        x, conv_w, window_strides=(ph, pw), padding="VALID",
        dimension_numbers=("NCHW", "OIHW", "NCHW"),
    ) + conv_b.reshape(1, E, 1, 1)
    ref = ref.reshape(B, E, -1).transpose(0, 2, 1)

    assert out.shape == (B, (H // ph) * (W // pw), E)
    assert out.dtype == x.dtype
    # bf16 operands with f32 accumulation -> loosened tolerance vs f32 reference.
    assert jnp.allclose(out, ref, atol=2e-2, rtol=2e-2)

    print("KERNEL_OK")
</pallas_src>

<mosaic_0001>
module attributes {stable_mosaic.version = 11 : i64} {
  func.func @_patch_embed_kernel(%arg0: i32, %arg1: memref<128x256xbf16, #tpu.memory_space<vmem>>, %arg2: memref<256x128xbf16, #tpu.memory_space<vmem>>, %arg3: memref<1x128xf32, #tpu.memory_space<vmem>>, %arg4: memref<128x128xf32, #tpu.memory_space<vmem>>) attributes {dimension_semantics = [#tpu.dimension_semantics<parallel>], iteration_bounds = array<i64: 1>, scalar_prefetch = 0 : i64, scratch_operands = 0 : i64, tpu.core_type = #tpu.core_type<tc>, window_params = [{transform_indices = @transform_0, window_bounds = array<i64: 128, 256>}, {pipeline_mode = #tpu.pipeline_mode<synchronous>, transform_indices = @transform_1, window_bounds = array<i64: 256, 128>}, {pipeline_mode = #tpu.pipeline_mode<synchronous>, transform_indices = @transform_2, window_bounds = array<i64: 1, 128>}, {transform_indices = @transform_3, window_bounds = array<i64: 128, 128>}]} {
    %c0 = arith.constant 0 : index
    %c0_0 = arith.constant 0 : index
    %0 = vector.load %arg1[%c0, %c0_0] : memref<128x256xbf16, #tpu.memory_space<vmem>>, vector<128x256xbf16>
    %c0_1 = arith.constant 0 : index
    %c0_2 = arith.constant 0 : index
    %1 = vector.load %arg2[%c0_1, %c0_2] : memref<256x128xbf16, #tpu.memory_space<vmem>>, vector<256x128xbf16>
    %cst = arith.constant dense<0.000000e+00> : vector<128x128xf32>
    %2 = tpu.matmul %0, %1, %cst {dimension_numbers = #tpu.dot_dimension_numbers<[1], [0], [0], [1], [0, 0, 1, 1], [], []>} : vector<128x256xbf16>, vector<256x128xbf16>, vector<128x128xf32> -> vector<128x128xf32>
    %c0_3 = arith.constant 0 : index
    %c0_4 = arith.constant 0 : index
    %3 = vector.load %arg3[%c0_3, %c0_4] : memref<1x128xf32, #tpu.memory_space<vmem>>, vector<1x128xf32>
    %4 = vector.broadcast %3 : vector<1x128xf32> to vector<128x128xf32>
    %5 = arith.addf %2, %4 : vector<128x128xf32>
    %c0_5 = arith.constant 0 : index
    %c0_6 = arith.constant 0 : index
    %6 = vector.load %arg4[%c0_5, %c0_6] : memref<128x128xf32, #tpu.memory_space<vmem>>, vector<128x128xf32>
    tpu.vector_store %arg4[%c0_5, %c0_6], %5 {strides = array<i32>} : memref<128x128xf32, #tpu.memory_space<vmem>>, vector<128x128xf32>,
    return
  }
  func.func @transform_0(%arg0: i32) -> (i32, i32) {
    %c0_i32 = arith.constant 0 : i32
    %c0_i32_0 = arith.constant 0 : i32
    return %arg0, %c0_i32 : i32, i32
  }
  func.func @transform_1(%arg0: i32) -> (i32, i32) {
    %c0_i32 = arith.constant 0 : i32
    %c0_i32_0 = arith.constant 0 : i32
    %c0_i32_1 = arith.constant 0 : i32
    return %c0_i32, %c0_i32_0 : i32, i32
  }
  func.func @transform_2(%arg0: i32) -> (i32, i32) {
    %c0_i32 = arith.constant 0 : i32
    %c0_i32_0 = arith.constant 0 : i32
    %c0_i32_1 = arith.constant 0 : i32
    return %c0_i32, %c0_i32_0 : i32, i32
  }
  func.func @transform_3(%arg0: i32) -> (i32, i32) {
    %c0_i32 = arith.constant 0 : i32
    %c0_i32_0 = arith.constant 0 : i32
    return %arg0, %c0_i32 : i32, i32
  }
}

</mosaic_0001>

<llo_original>
// kernel: tpu_custom_call.1
$region0: #{tpu_custom_call.1}
  #allocation0 [shape = 'u32[]', space=smem, size = 0x4, offset = 0x4, fixed_abs, tag = 'smem constant byte address 0x4 - core index']
  #allocation1 [shape = 'u32[72,128]{1,0:T(1,128)}', space=vmem, size = 0x9000, scoped, tag = 'internal scratch']
  %s0 = inlined_call_operand.hbm [shape: bf16[128,256], index: 0, kind: input, shape index: {}]
  %s1 = inlined_call_operand.hbm [shape: bf16[256,128], index: 1, kind: input, shape index: {}]
  %s2 = inlined_call_operand.vmem [shape: f32[1,128], index: 2, kind: input, shape index: {}]
  %s3 = inlined_call_operand.hbm [shape: f32[128,128], index: 3, kind: output, shape index: {}]
  %s4 = sld [smem:[#allocation0]]
  $region30: #{tpu_custom_call.1} parent=0
    _
  %s6 = ssub.s32 1, %s4
  %s7 = scalar_select 0, %s6, %s4
  $region1: #{tpu_custom_call.1} parent=0
    #allocation2 [shape = 'u8[65536]{0}', space=vmem, size = 0x10000, scoped, tag = 'input window, operand 0, single buffered']
    #allocation3 [shape = 's32[1]{0}', space=sflag, size = 0x4, scoped, tag = 'scoped memory for tpu_custom_call.1']
    #allocation4 [shape = 's32[1]{0}', space=sflag, size = 0x4, scoped, tag = 'scoped memory for tpu_custom_call.1']
    #allocation5 [shape = 'u8[65536]{0}', space=vmem, size = 0x10000, scoped, tag = 'input window, operand 1, single buffered']
    #allocation6 [shape = 's32[1]{0}', space=sflag, size = 0x4, scoped, tag = 'scoped memory for tpu_custom_call.1']
    #allocation7 [shape = 'u8[65536]{0}', space=vmem, size = 0x10000, scoped, tag = 'output window, operand 0, single buffered']
    %8 = vsyncpa [#allocation3], 0
    %9 = vsyncpa [#allocation6], 0
    %10 = vsyncpa [#allocation4], 0
    // Predicated region
    $region2: #{tpu_custom_call.1} parent=1 // pred_check
      _
    $region3: #{tpu_custom_call.1} parent=1 // pred_check_branch
      %12 = sbr.rel (0) target = $region5
    $region4: #{tpu_custom_call.1} parent=1 // pred_region
      %14 = vsyncadd [#allocation3], 0
      %s15 = sshll.u32 %s0, 4
      %s16 = int_to_ptr.hbm [resolvable:$true] %s15
      %s17 = sshll.u32 [#allocation2], 4
      %s18 = int_to_ptr.vmem [resolvable:$true] %s17
      %23 = dma.hbm_to_vmem [thread:$0]  %s16, 2048, %s18, [#allocation3], 128, 128, 8
    $region5: #{tpu_custom_call.1} parent=1 // pred_fallthru
      _
    // Predicated region
    $region6: #{tpu_custom_call.1} parent=1 // pred_check
      _
    $region7: #{tpu_custom_call.1} parent=1 // pred_check_branch
      %25 = sbr.rel (0) target = $region9
    $region8: #{tpu_custom_call.1} parent=1 // pred_region
      %27 = vsyncadd [#allocation6], 0
      %s28 = sshll.u32 %s1, 4
      %s29 = int_to_ptr.hbm [resolvable:$true] %s28
      %s30 = sshll.u32 [#allocation5], 4
      %s31 = int_to_ptr.vmem [resolvable:$true] %s30
      %36 = dma.hbm_to_vmem [thread:$0]  %s29, 2048, %s31, [#allocation6], 64, 64, 4
    $region9: #{tpu_custom_call.1} parent=1 // pred_fallthru
      _
    // Predicated region
    $region10: #{tpu_custom_call.1} parent=1 // pred_check
      _
    $region11: #{tpu_custom_call.1} parent=1 // pred_check_branch
      %38 = sbr.rel (0) target = $region13
    $region12: #{tpu_custom_call.1} parent=1 // pred_region
      _
    $region13: #{tpu_custom_call.1} parent=1 // pred_fallthru
      _
    // Predicated region
    $region14: #{tpu_custom_call.1} parent=1 // pred_check
      _
    $region15: #{tpu_custom_call.1} parent=1 // pred_check_branch
      %40 = sbr.rel (0) target = $region17
    $region16: #{tpu_custom_call.1} parent=1 // pred_region
      %42 = dma.done [#allocation3], 2048
    $region17: #{tpu_custom_call.1} parent=1 // pred_fallthru
      _
    // Predicated region
    $region18: #{tpu_custom_call.1} parent=1 // pred_check
      _
    $region19: #{tpu_custom_call.1} parent=1 // pred_check_branch
      %44 = sbr.rel (0) target = $region21
    $region20: #{tpu_custom_call.1} parent=1 // pred_region
      %46 = dma.done [#allocation6], 2048
    $region21: #{tpu_custom_call.1} parent=1 // pred_fallthru
      _
    %v47 = vld [vmem:[#allocation2] sm:$0xff]
    %v48 = vld [vmem:[#allocation2 + $0x8] sm:$0xff]
    %v49 = vld [vmem:[#allocation2 + $0x10] sm:$0xff]
    %v50 = vld [vmem:[#allocation2 + $0x18] sm:$0xff]
    %v51 = vld [vmem:[#allocation2 + $0x20] sm:$0xff]
    %v52 = vld [vmem:[#allocation2 + $0x28] sm:$0xff]
    %v53 = vld [vmem:[#allocation2 + $0x30] sm:$0xff]
    %v54 = vld [vmem:[#allocation2 + $0x38] sm:$0xff]
    %v55 = vld [vmem:[#allocation2 + $0x40] sm:$0xff]
    %v56 = vld [vmem:[#allocation2 + $0x48] sm:$0xff]
    %v57 = vld [vmem:[#allocation2 + $0x50] sm:$0xff]
    %v58 = vld [vmem:[#allocation2 + $0x58] sm:$0xff]
    %v59 = vld [vmem:[#allocation2 + $0x60] sm:$0xff]
    %v60 = vld [vmem:[#allocation2 + $0x68] sm:$0xff]
    %v61 = vld [vmem:[#allocation2 + $0x70] sm:$0xff]
    %v62 = vld [vmem:[#allocation2 + $0x78] sm:$0xff]
    %v63 = vld [vmem:[#allocation5] sm:$0xf]
    %v64 = vld [vmem:[#allocation5 + $0x4] sm:$0xf]
    %v65 = vld [vmem:[#allocation5 + $0x8] sm:$0xf]
    %v66 = vld [vmem:[#allocation5 + $0xc] sm:$0xf]
    %v67 = vld [vmem:[#allocation5 + $0x10] sm:$0xf]
    %v68 = vld [vmem:[#allocation5 + $0x14] sm:$0xf]
    %v69 = vld [vmem:[#allocation5 + $0x18] sm:$0xf]
    %v70 = vld [vmem:[#allocation5 + $0x1c] sm:$0xf]
    %v71 = vld [vmem:[#allocation5 + $0x20] sm:$0xf]
    %v72 = vld [vmem:[#allocation5 + $0x24] sm:$0xf]
    %v73 = vld [vmem:[#allocation5 + $0x28] sm:$0xf]
    %v74 = vld [vmem:[#allocation5 + $0x2c] sm:$0xf]
    %v75 = vld [vmem:[#allocation5 + $0x30] sm:$0xf]
    %v76 = vld [vmem:[#allocation5 + $0x34] sm:$0xf]
    %v77 = vld [vmem:[#allocation5 + $0x38] sm:$0xf]
    %v78 = vld [vmem:[#allocation5 + $0x3c] sm:$0xf]
    %v79 = vld [vmem:[#allocation5 + $0x40] sm:$0xf]
    %v80 = vld [vmem:[#allocation5 + $0x44] sm:$0xf]
    %v81 = vld [vmem:[#allocation5 + $0x48] sm:$0xf]
    %v82 = vld [vmem:[#allocation5 + $0x4c] sm:$0xf]
    %v83 = vld [vmem:[#allocation5 + $0x50] sm:$0xf]
    %v84 = vld [vmem:[#allocation5 + $0x54] sm:$0xf]
    %v85 = vld [vmem:[#allocation5 + $0x58] sm:$0xf]
    %v86 = vld [vmem:[#allocation5 + $0x5c] sm:$0xf]
    %v87 = vld [vmem:[#allocation5 + $0x60] sm:$0xf]
    %v88 = vld [vmem:[#allocation5 + $0x64] sm:$0xf]
    %v89 = vld [vmem:[#allocation5 + $0x68] sm:$0xf]
    %v90 = vld [vmem:[#allocation5 + $0x6c] sm:$0xf]
    %v91 = vld [vmem:[#allocation5 + $0x70] sm:$0xf]
    %v92 = vld [vmem:[#allocation5 + $0x74] sm:$0xf]
    %v93 = vld [vmem:[#allocation5 + $0x78] sm:$0xf]
    %v94 = vld [vmem:[#allocation5 + $0x7c] sm:$0xf]
    %v95 = vld [vmem:[%s2] sm:$0x1]
    %v97 = vperm.slane %v95, 0
    %v115 = vunpack.c.l.b16 %v47
    %v116 = vunpack.c.h.b16 %v47
    %v117 = vunpack.c.l.b16 %v48
    %v118 = vunpack.c.h.b16 %v48
    %v119 = vunpack.c.l.b16 %v49
    %v120 = vunpack.c.h.b16 %v49
    %v121 = vunpack.c.l.b16 %v50
    %v122 = vunpack.c.h.b16 %v50
    %v123 = vunpack.c.l.b16 %v51
    %v124 = vunpack.c.h.b16 %v51
    %v125 = vunpack.c.l.b16 %v52
    %v126 = vunpack.c.h.b16 %v52
    %v127 = vunpack.c.l.b16 %v53
    %v128 = vunpack.c.h.b16 %v53
    %v129 = vunpack.c.l.b16 %v54
    %v130 = vunpack.c.h.b16 %v54
    %v131 = vunpack.c.l.b16 %v55
    %v132 = vunpack.c.h.b16 %v55
    %v133 = vunpack.c.l.b16 %v56
    %v134 = vunpack.c.h.b16 %v56
    %v135 = vunpack.c.l.b16 %v57
    %v136 = vunpack.c.h.b16 %v57
    %v137 = vunpack.c.l.b16 %v58
    %v138 = vunpack.c.h.b16 %v58
    %v139 = vunpack.c.l.b16 %v59
    %v140 = vunpack.c.h.b16 %v59
    %v141 = vunpack.c.l.b16 %v60
    %v142 = vunpack.c.h.b16 %v60
    %v143 = vunpack.c.l.b16 %v61
    %v144 = vunpack.c.h.b16 %v61
    %v145 = vunpack.c.l.b16 %v62
    %v146 = vunpack.c.h.b16 %v62
    %v147 = vpack.c.b16 %v117, %v115
    %v148 = vpack.c.b16 %v118, %v116
    %v149 = vpack.c.b16 %v121, %v119
    %v150 = vpack.c.b16 %v122, %v120
    %v151 = vpack.c.b16 %v125, %v123
    %v152 = vpack.c.b16 %v126, %v124
    %v153 = vpack.c.b16 %v129, %v127
    %v154 = vpack.c.b16 %v130, %v128
    %v155 = vpack.c.b16 %v133, %v131
    %v156 = vpack.c.b16 %v134, %v132
    %v157 = vpack.c.b16 %v137, %v135
    %v158 = vpack.c.b16 %v138, %v136
    %v159 = vpack.c.b16 %v141, %v139
    %v160 = vpack.c.b16 %v142, %v140
    %v161 = vpack.c.b16 %v145, %v143
    %v162 = vpack.c.b16 %v146, %v144
    %v211 = vunpack.c.l.b16 %v63
    %v212 = vunpack.c.l.b16 %v64
    %v213 = vunpack.c.l.b16 %v65
    %v214 = vunpack.c.l.b16 %v66
    %v215 = vunpack.c.l.b16 %v67
    %v216 = vunpack.c.l.b16 %v68
    %v217 = vunpack.c.l.b16 %v69
    %v218 = vunpack.c.l.b16 %v70
    %v219 = vunpack.c.l.b16 %v71
    %v220 = vunpack.c.l.b16 %v72
    %v221 = vunpack.c.l.b16 %v73
    %v222 = vunpack.c.l.b16 %v74
    %v223 = vunpack.c.l.b16 %v75
    %v224 = vunpack.c.l.b16 %v76
    %v225 = vunpack.c.l.b16 %v77
    %v226 = vunpack.c.l.b16 %v78
    %v227 = vunpack.c.l.b16 %v79
    %v228 = vunpack.c.l.b16 %v80
    %v229 = vunpack.c.l.b16 %v81
    %v230 = vunpack.c.l.b16 %v82
    %v231 = vunpack.c.l.b16 %v83
    %v232 = vunpack.c.l.b16 %v84
    %v233 = vunpack.c.l.b16 %v85
    %v234 = vunpack.c.l.b16 %v86
    %v235 = vunpack.c.l.b16 %v87
    %v236 = vunpack.c.l.b16 %v88
    %v237 = vunpack.c.l.b16 %v89
    %v238 = vunpack.c.l.b16 %v90
    %v239 = vunpack.c.l.b16 %v91
    %v240 = vunpack.c.l.b16 %v92
    %v241 = vunpack.c.l.b16 %v93
    %v242 = vunpack.c.l.b16 %v94
    %v243 = vpack.c.b16 %v212, %v211
    %v244 = vpack.c.b16 %v214, %v213
    %v245 = vpack.c.b16 %v216, %v215
    %v246 = vpack.c.b16 %v218, %v217
    %v247 = vpack.c.b16 %v220, %v219
    %v248 = vpack.c.b16 %v222, %v221
    %v249 = vpack.c.b16 %v224, %v223
    %v250 = vpack.c.b16 %v226, %v225
    %v251 = vpack.c.b16 %v228, %v227
    %v252 = vpack.c.b16 %v230, %v229
    %v253 = vpack.c.b16 %v232, %v231
    %v254 = vpack.c.b16 %v234, %v233
    %v255 = vpack.c.b16 %v236, %v235
    %v256 = vpack.c.b16 %v238, %v237
    %v257 = vpack.c.b16 %v240, %v239
    %v258 = vpack.c.b16 %v242, %v241
    %275 = vmatpush.bf16.msra.mxu0 %v250
    %276 = vmatpush.bf16.msra.mxu0 %v249
    %277 = vmatpush.bf16.msra.mxu0 %v248
    %278 = vmatpush.bf16.msra.mxu0 %v247
    %279 = vmatpush.bf16.msra.mxu0 %v246
    %280 = vmatpush.bf16.msra.mxu0 %v245
    %281 = vmatpush.bf16.msra.mxu0 %v244
    %282 = vmatpush.bf16.msra.mxu0 %v243
    %283 = vmatmul.bf16.gmra.mxu0 %v147
    %v284 = vpop.f32.mrf.mxu0
    %v285 = vadd.f32 %v97, %v284
    %v286 = vpop.f32.mrf.mxu0
    %v287 = vadd.f32 %v97, %v286
    %288 = vmatmul.bf16.gmra.mxu0 %v149
    %v289 = vpop.f32.mrf.mxu0
    %v290 = vadd.f32 %v97, %v289
    %v291 = vpop.f32.mrf.mxu0
    %v292 = vadd.f32 %v97, %v291
    %293 = vmatmul.bf16.gmra.mxu0 %v151
    %v294 = vpop.f32.mrf.mxu0
    %v295 = vadd.f32 %v97, %v294
    %v296 = vpop.f32.mrf.mxu0
    %v297 = vadd.f32 %v97, %v296
    %298 = vmatmul.bf16.gmra.mxu0 %v153
    %v299 = vpop.f32.mrf.mxu0
    %v300 = vadd.f32 %v97, %v299
    %v301 = vpop.f32.mrf.mxu0
    %v302 = vadd.f32 %v97, %v301
    %303 = vmatmul.bf16.gmra.mxu0 %v155
    %v304 = vpop.f32.mrf.mxu0
    %v305 = vadd.f32 %v97, %v304
    %v306 = vpop.f32.mrf.mxu0
    %v307 = vadd.f32 %v97, %v306
    %308 = vmatmul.bf16.gmra.mxu0 %v157
    %v309 = vpop.f32.mrf.mxu0
    %v310 = vadd.f32 %v97, %v309
    %v311 = vpop.f32.mrf.mxu0
    %v312 = vadd.f32 %v97, %v311
    %313 = vmatmul.bf16.gmra.mxu0 %v159
    %v314 = vpop.f32.mrf.mxu0
    %v315 = vadd.f32 %v97, %v314
    %v316 = vpop.f32.mrf.mxu0
    %v317 = vadd.f32 %v97, %v316
    %318 = vmatmul.bf16.gmra.mxu0 %v161
    %v319 = vpop.f32.mrf.mxu0
    %v320 = vadd.f32 %v97, %v319
    %v321 = vpop.f32.mrf.mxu0
    %v322 = vadd.f32 %v97, %v321
    %323 = vdwg.mxu0
    %324 = vmatpush.bf16.msra.mxu0 %v258
    %325 = vmatpush.bf16.msra.mxu0 %v257
    %326 = vmatpush.bf16.msra.mxu0 %v256
    %327 = vmatpush.bf16.msra.mxu0 %v255
    %328 = vmatpush.bf16.msra.mxu0 %v254
    %329 = vmatpush.bf16.msra.mxu0 %v253
    %330 = vmatpush.bf16.msra.mxu0 %v252
    %331 = vmatpush.bf16.msra.mxu0 %v251
    %332 = vmatmul.bf16.gmra.mxu0 %v148
    %v333 = vpop.f32.mrf.mxu0
    %v334 = vadd.f32 %v285, %v333
    %v335 = vpop.f32.mrf.mxu0
    %v336 = vadd.f32 %v287, %v335
    %337 = vmatmul.bf16.gmra.mxu0 %v150
    %v338 = vpop.f32.mrf.mxu0
    %v339 = vadd.f32 %v290, %v338
    %v340 = vpop.f32.mrf.mxu0
    %v341 = vadd.f32 %v292, %v340
    %342 = vmatmul.bf16.gmra.mxu0 %v152
    %v343 = vpop.f32.mrf.mxu0
    %v344 = vadd.f32 %v295, %v343
    %v345 = vpop.f32.mrf.mxu0
    %v346 = vadd.f32 %v297, %v345
    %347 = vmatmul.bf16.gmra.mxu0 %v154
    %v348 = vpop.f32.mrf.mxu0
    %v349 = vadd.f32 %v300, %v348
    %v350 = vpop.f32.mrf.mxu0
    %v351 = vadd.f32 %v302, %v350
    %352 = vmatmul.bf16.gmra.mxu0 %v156
    %v353 = vpop.f32.mrf.mxu0
    %v354 = vadd.f32 %v305, %v353
    %v355 = vpop.f32.mrf.mxu0
    %v356 = vadd.f32 %v307, %v355
    %357 = vmatmul.bf16.gmra.mxu0 %v158
    %v358 = vpop.f32.mrf.mxu0
    %v359 = vadd.f32 %v310, %v358
    %v360 = vpop.f32.mrf.mxu0
    %v361 = vadd.f32 %v312, %v360
    %362 = vmatmul.bf16.gmra.mxu0 %v160
    %v363 = vpop.f32.mrf.mxu0
    %v364 = vadd.f32 %v315, %v363
    %v365 = vpop.f32.mrf.mxu0
    %v366 = vadd.f32 %v317, %v365
    %367 = vmatmul.bf16.gmra.mxu0 %v162
    %v368 = vpop.f32.mrf.mxu0
    %v369 = vadd.f32 %v320, %v368
    %v370 = vpop.f32.mrf.mxu0
    %v371 = vadd.f32 %v322, %v370
    %372 = vdwg.mxu0
    %373 = vst [vmem:[#allocation7] sm:$0xff] %v334
    %374 = vst [vmem:[#allocation7 + $0x8] sm:$0xff] %v336
    %375 = vst [vmem:[#allocation7 + $0x10] sm:$0xff] %v339
    %376 = vst [vmem:[#allocation7 + $0x18] sm:$0xff] %v341
    %377 = vst [vmem:[#allocation7 + $0x20] sm:$0xff] %v344
    %378 = vst [vmem:[#allocation7 + $0x28] sm:$0xff] %v346
    %379 = vst [vmem:[#allocation7 + $0x30] sm:$0xff] %v349
    %380 = vst [vmem:[#allocation7 + $0x38] sm:$0xff] %v351
    %381 = vst [vmem:[#allocation7 + $0x40] sm:$0xff] %v354
    %382 = vst [vmem:[#allocation7 + $0x48] sm:$0xff] %v356
    %383 = vst [vmem:[#allocation7 + $0x50] sm:$0xff] %v359
    %384 = vst [vmem:[#allocation7 + $0x58] sm:$0xff] %v361
    %385 = vst [vmem:[#allocation7 + $0x60] sm:$0xff] %v364
    %386 = vst [vmem:[#allocation7 + $0x68] sm:$0xff] %v366
    %387 = vst [vmem:[#allocation7 + $0x70] sm:$0xff] %v369
    %388 = vst [vmem:[#allocation7 + $0x78] sm:$0xff] %v371
    // Predicated region
    $region22: #{tpu_custom_call.1} parent=1 // pred_check
      _
    $region23: #{tpu_custom_call.1} parent=1 // pred_check_branch
      %390 = sbr.rel (0) target = $region25
    $region24: #{tpu_custom_call.1} parent=1 // pred_region
      %392 = vsyncadd [#allocation4], 0
      %s393 = sshll.u32 [#allocation7], 4
      %s394 = int_to_ptr.vmem [resolvable:$true] %s393
      %s395 = sshll.u32 %s3, 4
      %s396 = int_to_ptr.hbm [resolvable:$true] %s395
      %401 = dma.vmem_to_hbm [thread:$0]  %s394, 2048, %s396, [#allocation4], 128, 128, 8
    $region25: #{tpu_custom_call.1} parent=1 // pred_fallthru
      _
    // Predicated region
    $region26: #{tpu_custom_call.1} parent=1 // pred_check
      _
    $region27: #{tpu_custom_call.1} parent=1 // pred_check_branch
      %403 = sbr.rel (0) target = $region29
    $region28: #{tpu_custom_call.1} parent=1 // pred_region
      %405 = dma.done [#allocation4], 2048
    $region29: #{tpu_custom_call.1} parent=1 // pred_fallthru
      _
    %406 = vsyncpa [#allocation3], 1
    %407 = vsyncpa [#allocation6], 1
    %408 = vsyncpa [#allocation4], 1

</llo_original>
